<compile_context>
chip_gen: v5e
topology: v5e:2x2
jax: 0.10.0
libtpu: 0.0.40
codegen_flags: <defaults>
</compile_context>

<pallas_src>
import jax
import jax.numpy as jnp
from jax.experimental import pallas as pl
from jax.experimental.pallas import tpu as pltpu


def _round_up(n, m):
    return (n + m - 1) // m * m


def _cls_score_kernel(x_ref, wt_ref, b_ref, o_ref):
    # x_ref : (tm, C)   RoI-feature tile (pipelined over rows; last tile ragged)
    # wt_ref: (C, Kp)   pre-transposed, lane-padded fused weight slab (resident)
    # b_ref : (1, Kp)   lane-padded bias, f32 (resident)
    # o_ref : (tm, Kp)  lane-dense output tile
    acc = jnp.dot(x_ref[...], wt_ref[...], preferred_element_type=jnp.float32)
    o_ref[...] = (acc + b_ref[...]).astype(o_ref.dtype)


def prepare_cls_params(weight, bias, *, extra_heads=(), lane=128,
                       param_dtype=jnp.bfloat16, pad_bias_value=0.0):
    """One-time parameter preparation (call at model-load time, NOT per forward).

    weight / bias : cls_score nn.Linear parameters, (K, C) / (K,).
    extra_heads   : optional [(weight_i, bias_i), ...] sibling projections over
                    the same pooled features (e.g. a bbox_pred head), fused
                    along the output dim so x is read from HBM once for all.
    Returns (wt, b2, sizes):
      wt    : (C, Kp) transposed + concatenated weight, zero-padded to a lane
              multiple, cast to param_dtype (bf16 default for inference;
              pass jnp.float32 for exact nn.Linear semantics).
      b2    : (1, Kp) f32 bias; pad lanes get pad_bias_value (use a large
              negative value if you consume untrimmed Kp-wide logits directly
              in a softmax/argmax).
      sizes : per-head output widths; sizes[0] == num_classes.
    """
    heads = [(jnp.asarray(weight), jnp.asarray(bias))]
    heads += [(jnp.asarray(w), jnp.asarray(b)) for w, b in extra_heads]
    sizes = tuple(int(w.shape[0]) for w, _ in heads)

    wt = jnp.concatenate([w.T for w, _ in heads], axis=1)           # (C, K_total)
    b = jnp.concatenate([b.reshape(-1) for _, b in heads])          # (K_total,)
    K = wt.shape[1]
    Kp = _round_up(K, lane)
    if Kp != K:
        wt = jnp.pad(wt, ((0, 0), (0, Kp - K)))
        b = jnp.pad(b, (0, Kp - K), constant_values=pad_bias_value)
    if param_dtype is not None:
        wt = wt.astype(param_dtype)
    b2 = b.reshape(1, Kp).astype(jnp.float32)       # added to the f32 MXU accum
    return wt, b2, sizes


def _default_row_tile(n_rows):
    """Per-generation default row tile: 512 on v6e/v7x for large N (per-step
    overhead dominates the DMA at >=1.4 TB/s HBM), 256 on v5e / small N; capped
    at round_up(N, 8) so tiny batches don't pad."""
    try:
        kind = jax.devices()[0].device_kind.lower()
        on_v5 = "v5" in kind
    except Exception:                       # unknown backend: conservative
        on_v5 = True
    tm = 512 if (not on_v5 and n_rows >= 512) else 256
    return min(tm, _round_up(max(n_rows, 1), 8))


def fused_head_projection(x, wt, b2, *, tm=None, out_dtype=jnp.float32):
    """One MXU pass of all fused head projections: x @ wt + b2.

    x  : (N, C) pooled RoI features (f32, or bf16 for inference)
    wt : (C, Kp) prepared weight slab;  b2 : (1, Kp) prepared f32 bias
    Returns the lane-dense (N, Kp) slab (f32 accumulation, cast to out_dtype).
    """
    N, C = x.shape
    Cw, Kp = wt.shape
    assert C == Cw and Kp % 128 == 0
    if tm is None:
        tm = _default_row_tile(N)

    # Ragged last row tile is handled by Pallas (partial read / masked
    # writeback) — no jnp.pad round trip of x through HBM.
    grid = (pl.cdiv(N, tm),)

    cost = pl.CostEstimate(
        flops=2 * N * C * Kp,
        transcendentals=0,
        bytes_accessed=(N * C * x.dtype.itemsize
                        + C * Kp * wt.dtype.itemsize
                        + Kp * 4
                        + N * Kp * jnp.dtype(out_dtype).itemsize),
    )

    return pl.pallas_call(
        _cls_score_kernel,
        out_shape=jax.ShapeDtypeStruct((N, Kp), out_dtype),
        grid_spec=pltpu.PrefetchScalarGridSpec(
            num_scalar_prefetch=0,
            grid=grid,
            in_specs=[
                pl.BlockSpec((tm, C), lambda i: (i, 0)),   # RoI rows, pipelined
                pl.BlockSpec((C, Kp), lambda i: (0, 0)),   # weight slab, resident
                pl.BlockSpec((1, Kp), lambda i: (0, 0)),   # bias, resident
            ],
            out_specs=pl.BlockSpec((tm, Kp), lambda i: (i, 0)),
        ),
        compiler_params=pltpu.CompilerParams(
            dimension_semantics=("parallel",),  # row tiles shard across TCs on v7x
        ),
        cost_estimate=cost,
    )(x, wt, b2)


def split_heads(slab, sizes):
    """Split the fused (N, Kp) output slab back into per-head arrays."""
    outs, off = [], 0
    for k in sizes:
        outs.append(slab[:, off:off + k])
        off += k
    return tuple(outs)


def fast_rcnn_cls_score(x, wt, b2, num_classes, *, tm=None, trim=True,
                        out_dtype=jnp.float32):
    """FastRCNNPredictor.forward: logits = x @ weight.T + bias.

    trim=True  -> (N, num_classes) logits (exact nn.Linear semantics).
    trim=False -> lane-dense (N, Kp) slab (no sub-128-lane slice / extra HBM
                  copy); pad classes hold pad_bias_value — mask them before
                  any softmax/argmax in the consumer.
    """
    slab = fused_head_projection(x, wt, b2, tm=tm, out_dtype=out_dtype)
    if not trim:
        return slab
    return slab[:, :num_classes]


def detection_head_forward(roi_features, prepared_params, *, tm=None, trim=True):
    """DetectionHead forward, restricted to the layer defined in-module: the
    replaced box_predictor's cls_score Linear over pooled RoI features."""
    wt, b2, sizes = prepared_params
    return fast_rcnn_cls_score(roi_features, wt, b2, sizes[0], tm=tm, trim=trim)


if __name__ == "__main__":
    # Small synthetic shapes consistent with the module; num_rois is chosen NOT
    # to be a multiple of the row tile to exercise the ragged last tile.
    num_rois = 300
    in_channels = 256
    num_classes = 8

    key = jax.random.PRNGKey(0)
    k_x, k_w, k_b, k_w2, k_b2 = jax.random.split(key, 5)

    roi_features = jax.random.normal(
        k_x, (num_rois, in_channels), dtype=jnp.float32
    )

    # Deterministic parameter init (nn.Linear-style uniform fan-in scaling).
    bound = 1.0 / (in_channels ** 0.5)
    weight = jax.random.uniform(
        k_w, (num_classes, in_channels), jnp.float32, -bound, bound
    )
    bias = jax.random.uniform(k_b, (num_classes,), jnp.float32, -bound, bound)

    # Plain-JAX reference of the same Linear.
    ref = roi_features @ weight.T + bias

    # f32 path (validation-tight tolerance, exact nn.Linear semantics).
    params_f32 = prepare_cls_params(weight, bias, param_dtype=jnp.float32)
    logits = detection_head_forward(roi_features, params_f32)
    logits = jax.block_until_ready(logits)
    assert logits.shape == (num_rois, num_classes)
    assert jnp.allclose(logits, ref, atol=1e-5, rtol=1e-5)

    # Default bf16 inference path (halves x+W HBM bytes); f32 MXU accumulation.
    params_bf16 = prepare_cls_params(weight, bias)   # param_dtype=bf16 default
    logits16 = detection_head_forward(
        roi_features.astype(jnp.bfloat16), params_bf16
    )
    logits16 = jax.block_until_ready(logits16)
    assert logits16.shape == (num_rois, num_classes)
    assert jnp.allclose(logits16, ref, atol=5e-2, rtol=5e-2)

    # Fused sibling head (bbox_pred-style, 4*K outputs): one kernel reads x
    # once for both projections and widens the lane-dense output slab.
    w_bbox = jax.random.uniform(
        k_w2, (4 * num_classes, in_channels), jnp.float32, -bound, bound
    )
    b_bbox = jax.random.uniform(
        k_b2, (4 * num_classes,), jnp.float32, -bound, bound
    )
    ref_bbox = roi_features @ w_bbox.T + b_bbox

    wt_f, b2_f, sizes = prepare_cls_params(
        weight, bias, extra_heads=[(w_bbox, b_bbox)]
    )
    slab = fused_head_projection(roi_features.astype(jnp.bfloat16), wt_f, b2_f)
    slab = jax.block_until_ready(slab)
    cls_fused, bbox_fused = split_heads(slab, sizes)
    assert cls_fused.shape == (num_rois, num_classes)
    assert bbox_fused.shape == (num_rois, 4 * num_classes)
    assert jnp.allclose(cls_fused, ref, atol=5e-2, rtol=5e-2)
    assert jnp.allclose(bbox_fused, ref_bbox, atol=5e-2, rtol=5e-2)

    print("KERNEL_OK")
</pallas_src>

<mosaic_0001>
module attributes {stable_mosaic.version = 11 : i64} {
  func.func @_cls_score_kernel(%arg0: i32, %arg1: memref<256x256xf32, #tpu.memory_space<vmem>>, %arg2: memref<256x128xf32, #tpu.memory_space<vmem>>, %arg3: memref<1x128xf32, #tpu.memory_space<vmem>>, %arg4: memref<256x128xf32, #tpu.memory_space<vmem>>) attributes {dimension_semantics = [#tpu.dimension_semantics<parallel>], iteration_bounds = array<i64: 2>, scalar_prefetch = 0 : i64, scratch_operands = 0 : i64, tpu.core_type = #tpu.core_type<tc>, window_params = [{transform_indices = @transform_0, window_bounds = array<i64: 256, 256>}, {pipeline_mode = #tpu.pipeline_mode<synchronous>, transform_indices = @transform_1, window_bounds = array<i64: 256, 128>}, {pipeline_mode = #tpu.pipeline_mode<synchronous>, transform_indices = @transform_2, window_bounds = array<i64: 1, 128>}, {transform_indices = @transform_3, window_bounds = array<i64: 256, 128>}]} {
    %c0 = arith.constant 0 : index
    %c0_0 = arith.constant 0 : index
    %0 = vector.load %arg1[%c0, %c0_0] : memref<256x256xf32, #tpu.memory_space<vmem>>, vector<256x256xf32>
    %c0_1 = arith.constant 0 : index
    %c0_2 = arith.constant 0 : index
    %1 = vector.load %arg2[%c0_1, %c0_2] : memref<256x128xf32, #tpu.memory_space<vmem>>, vector<256x128xf32>
    %cst = arith.constant dense<0.000000e+00> : vector<256x128xf32>
    %2 = tpu.matmul %0, %1, %cst {dimension_numbers = #tpu.dot_dimension_numbers<[1], [0], [0], [1], [0, 0, 1, 1], [], []>} : vector<256x256xf32>, vector<256x128xf32>, vector<256x128xf32> -> vector<256x128xf32>
    %c0_3 = arith.constant 0 : index
    %c0_4 = arith.constant 0 : index
    %3 = vector.load %arg3[%c0_3, %c0_4] : memref<1x128xf32, #tpu.memory_space<vmem>>, vector<1x128xf32>
    %4 = vector.broadcast %3 : vector<1x128xf32> to vector<256x128xf32>
    %5 = arith.addf %2, %4 : vector<256x128xf32>
    %c0_5 = arith.constant 0 : index
    %c0_6 = arith.constant 0 : index
    %6 = vector.load %arg4[%c0_5, %c0_6] : memref<256x128xf32, #tpu.memory_space<vmem>>, vector<256x128xf32>
    tpu.vector_store %arg4[%c0_5, %c0_6], %5 {strides = array<i32>} : memref<256x128xf32, #tpu.memory_space<vmem>>, vector<256x128xf32>,
    return
  }
  func.func @transform_0(%arg0: i32) -> (i32, i32) {
    %c0_i32 = arith.constant 0 : i32
    %c0_i32_0 = arith.constant 0 : i32
    return %arg0, %c0_i32 : i32, i32
  }
  func.func @transform_1(%arg0: i32) -> (i32, i32) {
    %c0_i32 = arith.constant 0 : i32
    %c0_i32_0 = arith.constant 0 : i32
    %c0_i32_1 = arith.constant 0 : i32
    return %c0_i32, %c0_i32_0 : i32, i32
  }
  func.func @transform_2(%arg0: i32) -> (i32, i32) {
    %c0_i32 = arith.constant 0 : i32
    %c0_i32_0 = arith.constant 0 : i32
    %c0_i32_1 = arith.constant 0 : i32
    return %c0_i32, %c0_i32_0 : i32, i32
  }
  func.func @transform_3(%arg0: i32) -> (i32, i32) {
    %c0_i32 = arith.constant 0 : i32
    %c0_i32_0 = arith.constant 0 : i32
    return %arg0, %c0_i32 : i32, i32
  }
}

</mosaic_0001>

<llo_original>
// kernel: tpu_custom_call.1
$region0: #{tpu_custom_call.1}
  #allocation0 [shape = 'u32[]', space=smem, size = 0x4, offset = 0x4, fixed_abs, tag = 'smem constant byte address 0x4 - core index']
  #allocation1 [shape = 'u32[72,128]{1,0:T(1,128)}', space=vmem, size = 0x9000, scoped, tag = 'internal scratch']
  %s0 = inlined_call_operand.hbm [shape: f32[300,256], index: 0, kind: input, shape index: {}]
  %s1 = inlined_call_operand.hbm [shape: f32[256,128], index: 1, kind: input, shape index: {}]
  %s2 = inlined_call_operand.vmem [shape: f32[1,128], index: 2, kind: input, shape index: {}]
  %s3 = inlined_call_operand.hbm [shape: f32[300,128], index: 3, kind: output, shape index: {}]
  %s4 = sld [smem:[#allocation0]]
  $region53: #{tpu_custom_call.1} parent=0
    _
  %s6 = ssub.s32 1, %s4
  %s7 = scalar_select 0, %s6, %s4
  $region1: #{tpu_custom_call.1} parent=0
    #allocation2 [shape = 'u8[524288]{0}', space=vmem, size = 0x80000, scoped, tag = 'input window, operand 0']
    #allocation3 [shape = 's32[2]{0}', space=sflag, size = 0x8, scoped, tag = 'scoped memory for tpu_custom_call.1']
    #allocation4 [shape = 's32[2]{0}', space=sflag, size = 0x8, scoped, tag = 'scoped memory for tpu_custom_call.1']
    #allocation5 [shape = 'u8[131072]{0}', space=vmem, size = 0x20000, scoped, tag = 'input window, operand 1, single buffered']
    #allocation6 [shape = 's32[1]{0}', space=sflag, size = 0x4, scoped, tag = 'scoped memory for tpu_custom_call.1']
    #allocation7 [shape = 'u8[262144]{0}', space=vmem, size = 0x40000, scoped, tag = 'output window, operand 0']
    %8 = vsyncpa [#allocation3], 0
    %s9 = scalar_lea.sflag [#allocation3], 1
    %10 = vsyncpa %s9, 0
    %11 = vsyncpa [#allocation6], 0
    %12 = vsyncpa [#allocation4], 0
    %s13 = scalar_lea.sflag [#allocation4], 1
    %14 = vsyncpa %s13, 0
    loop: start=0, step=1, limit=4
    $region2: #{tpu_custom_call.1} parent=1 // loop_pre_header
      _
    $region3: #{tpu_custom_call.1} parent=1 // loop_header
      %s16 = sphi 0, %s20
      %p17 = scmp.ge.s32.totalorder %s16, 4
      %s26 = sphi 0, %s28
      %s29 = sphi 0, %s26
      %s30 = sphi 0, %s29
      %s46 = sphi 0, %s30
      %s50 = sphi 0, %s50
      %s52 = sphi 0, %s50
      %s53 = sphi 0, %s52
      %s67 = sphi 0, %s53
      %s71 = sphi 0, %s71
      %s73 = sphi 0, %s71
      %s74 = sphi 0, %s73
      %s88 = sphi 0, %s74
      %s94 = sphi 0, %s96
      %s97 = sphi 0, %s94
      %s98 = sphi 0, %s97
      %s114 = sphi 0, %s98
    $region4: #{tpu_custom_call.1} parent=1 // loop_header_branch
      %19 = sbr.rel (%p17) target = $region8
    $region5: #{tpu_custom_call.1} parent=1 // loop_body
      %s21 = ssub.s32 %s16, 1
      %s22 = ssub.s32 %s16, 2
      %s23 = sadd.s32 %s16, 1
      %s24 = ssub.s32 %s16, %s23
      %p25 = scmp.eq.s32.totalorder %s24, 0
      %s27 = sadd.s32 %s26, 1
      %s28 = scalar_select %p25, %s26, %s27
      %p31 = pneg %p25
      %p32 = scmp.eq.s32.totalorder %s16, 1
      %p33 = por %p31, %p32
      %p34 = scmp.ne.s32.totalorder %s26, %s29
      %p35 = scmp.eq.s32.totalorder %s16, 0
      %p36 = por %p34, %p35
      %p37 = scmp.ne.s32.totalorder %s26, %s29
      %p38 = scmp.eq.s32.totalorder %s21, 1
      %p39 = por %p37, %p38
      %p40 = scmp.ne.s32.totalorder %s29, %s30
      %p41 = scmp.eq.s32.totalorder %s21, 0
      %p42 = por %p40, %p41
      %p43 = scmp.ne.s32.totalorder %s29, %s30
      %p44 = scmp.eq.s32.totalorder %s22, 1
      %p45 = por %p43, %p44
      %p47 = scmp.ne.s32.totalorder %s30, %s46
      %p48 = scmp.eq.s32.totalorder %s22, 0
      %p49 = por %p47, %p48
      %s51 = sadd.s32 %s50, 1
      %p54 = scmp.eq.s32.totalorder %s16, 1
      %p55 = scmp.ne.s32.totalorder %s50, %s52
      %p56 = scmp.eq.s32.totalorder %s16, 0
      %p57 = por %p55, %p56
      %p58 = scmp.ne.s32.totalorder %s50, %s52
      %p59 = scmp.eq.s32.totalorder %s21, 1
      %p60 = por %p58, %p59
      %p61 = scmp.ne.s32.totalorder %s52, %s53
      %p62 = scmp.eq.s32.totalorder %s21, 0
      %p63 = por %p61, %p62
      %p64 = scmp.ne.s32.totalorder %s52, %s53
      %p65 = scmp.eq.s32.totalorder %s22, 1
      %p66 = por %p64, %p65
      %p68 = scmp.ne.s32.totalorder %s53, %s67
      %p69 = scmp.eq.s32.totalorder %s22, 0
      %p70 = por %p68, %p69
      %s72 = sadd.s32 %s71, 1
      %p75 = scmp.eq.s32.totalorder %s16, 1
      %p76 = scmp.ne.s32.totalorder %s71, %s73
      %p77 = scmp.eq.s32.totalorder %s16, 0
      %p78 = por %p76, %p77
      %p79 = scmp.ne.s32.totalorder %s71, %s73
      %p80 = scmp.eq.s32.totalorder %s21, 1
      %p81 = por %p79, %p80
      %p82 = scmp.ne.s32.totalorder %s73, %s74
      %p83 = scmp.eq.s32.totalorder %s21, 0
      %p84 = por %p82, %p83
      %p85 = scmp.ne.s32.totalorder %s73, %s74
      %p86 = scmp.eq.s32.totalorder %s22, 1
      %p87 = por %p85, %p86
      %p89 = scmp.ne.s32.totalorder %s74, %s88
      %p90 = scmp.eq.s32.totalorder %s22, 0
      %p91 = por %p89, %p90
      %s92 = ssub.s32 %s16, %s23
      %p93 = scmp.eq.s32.totalorder %s92, 0
      %s95 = sadd.s32 %s94, 1
      %s96 = scalar_select %p93, %s94, %s95
      %p99 = pneg %p93
      %p100 = scmp.eq.s32.totalorder %s16, 1
      %p101 = por %p99, %p100
      %p102 = scmp.ne.s32.totalorder %s94, %s97
      %p103 = scmp.eq.s32.totalorder %s16, 0
      %p104 = por %p102, %p103
      %p105 = scmp.ne.s32.totalorder %s94, %s97
      %p106 = scmp.eq.s32.totalorder %s21, 1
      %p107 = por %p105, %p106
      %p108 = scmp.ne.s32.totalorder %s97, %s98
      %p109 = scmp.eq.s32.totalorder %s21, 0
      %p110 = por %p108, %p109
      %p111 = scmp.ne.s32.totalorder %s97, %s98
      %p112 = scmp.eq.s32.totalorder %s22, 1
      %p113 = por %p111, %p112
      %p115 = scmp.ne.s32.totalorder %s98, %s114
      %p116 = scmp.eq.s32.totalorder %s22, 0
      %p117 = por %p115, %p116
      %p118 = scmp.le.s32.totalorder 1, %s16
      %p119 = scmp.lt.s32.totalorder %s16, 3
      %p120 = pnand %p118, %p119
      %p121 = pneg %p120
      // Predicated region
      $region9: #{tpu_custom_call.1} parent=5 // pred_check
        _
      $region10: #{tpu_custom_call.1} parent=5 // pred_check_branch
        %123 = sbr.rel (%p120) target = $region12
      $region11: #{tpu_custom_call.1} parent=5 // pred_region
        %s124 = ssub.s32 %s16, 1
        // Predicated region
        $region13: #{tpu_custom_call.1} parent=11 // pred_check
          %p125 = pneg %p63
        $region14: #{tpu_custom_call.1} parent=11 // pred_check_branch
          %127 = sbr.rel (%p125) target = $region16
        $region15: #{tpu_custom_call.1} parent=11 // pred_region
          %129 = vsyncadd [#allocation6], 0
          %s130 = sshll.u32 %s1, 4
          %s131 = int_to_ptr.hbm [resolvable:$true] %s130
          %s132 = sshll.u32 [#allocation5], 4
          %s133 = int_to_ptr.vmem [resolvable:$true] %s132
          %138 = dma.hbm_to_vmem [thread:$0]  %s131, 4096, %s133, [#allocation6], 128, 128, 8
        $region16: #{tpu_custom_call.1} parent=11 // pred_fallthru
          _
        // Predicated region
        $region17: #{tpu_custom_call.1} parent=11 // pred_check
          %p139 = pneg %p84
        $region18: #{tpu_custom_call.1} parent=11 // pred_check_branch
          %141 = sbr.rel (%p139) target = $region20
        $region19: #{tpu_custom_call.1} parent=11 // pred_region
          _
        $region20: #{tpu_custom_call.1} parent=11 // pred_fallthru
          _
      $region12: #{tpu_custom_call.1} parent=5 // pred_fallthru
        _
      %p142 = scmp.lt.s32.totalorder %s16, 2
      // Predicated region
      $region21: #{tpu_custom_call.1} parent=5 // pred_check
        %p143 = pneg %p142
      $region22: #{tpu_custom_call.1} parent=5 // pred_check_branch
        %145 = sbr.rel (%p143) target = $region24
      $region23: #{tpu_custom_call.1} parent=5 // pred_region
        // Predicated region
        $region25: #{tpu_custom_call.1} parent=23 // pred_check
          %p146 = pneg %p36
        $region26: #{tpu_custom_call.1} parent=23 // pred_check_branch
          %148 = sbr.rel (%p146) target = $region28
        $region27: #{tpu_custom_call.1} parent=23 // pred_region
          %s149 = sand.u32 %s26, 1
          %s150 = scalar_lea.sflag [#allocation3], %s149
          %s151 = sand.u32 %s26, 1
          %s152 = smul.addr %s151, 512
          %s153 = scalar_lea.vmem [#allocation2], %s152
          %s154 = smul.u32 32, %s16
          %s155 = ssub.s32 38, %s154
          %p156 = scmp.lt.s32.totalorder %s155, 32
          %s157 = scalar_select %p156, %s155, 32
          %s158 = smul.u32 8, %s157
          %s159 = smul.u32 %s158, 2
          %s160 = ssub.s32 512, %s159
          %s161 = sshll.u32 %s160, 4
          %162 = vsyncadd %s150, %s161
          %p163 = scmp.ne.s32.totalorder 0, %s159
          %s164 = smul.addr %s154, 2
          %s165 = smul.addr %s164, 8
          %s166 = scalar_lea.hbm %s0, %s165
          %s167 = smul.u32 16, %s157
          %s168 = sshll.u32 %s166, 4
          %s169 = int_to_ptr.hbm [resolvable:$true] %s168
          %s170 = sshll.u32 %s153, 4
          %s171 = int_to_ptr.vmem [resolvable:$true] %s170
          %s172 = sshll.u32 %s167, 4
          %176 = dma.hbm_to_vmem [thread:$0]  (%p163), %s169, %s172, %s171, %s150, 256, 256, 16
        $region28: #{tpu_custom_call.1} parent=23 // pred_fallthru
          _
      $region24: #{tpu_custom_call.1} parent=5 // pred_fallthru
        _
      %p177 = scmp.le.s32.totalorder 1, %s16
      %p178 = scmp.lt.s32.totalorder %s16, 3
      %p179 = pnand %p177, %p178
      %p180 = pneg %p179
      // Predicated region
      $region29: #{tpu_custom_call.1} parent=5 // pred_check
        _
      $region30: #{tpu_custom_call.1} parent=5 // pred_check_branch
        %182 = sbr.rel (%p179) target = $region32
      $region31: #{tpu_custom_call.1} parent=5 // pred_region
        %s183 = ssub.s32 %s16, 1
        %s184 = sand.u32 %s29, 1
        %s185 = scalar_lea.sflag [#allocation3], %s184
        %s186 = sand.u32 %s29, 1
        %s187 = smul.addr %s186, 512
        %s188 = scalar_lea.vmem [#allocation2], %s187
        // Predicated region
        $region33: #{tpu_custom_call.1} parent=31 // pred_check
          %p189 = pneg %p42
        $region34: #{tpu_custom_call.1} parent=31 // pred_check_branch
          %191 = sbr.rel (%p189) target = $region36
        $region35: #{tpu_custom_call.1} parent=31 // pred_region
          %193 = dma.done %s185, 8192
        $region36: #{tpu_custom_call.1} parent=31 // pred_fallthru
          _
        // Predicated region
        $region37: #{tpu_custom_call.1} parent=31 // pred_check
          %p194 = pneg %p63
        $region38: #{tpu_custom_call.1} parent=31 // pred_check_branch
          %196 = sbr.rel (%p194) target = $region40
        $region39: #{tpu_custom_call.1} parent=31 // pred_region
          %198 = dma.done [#allocation6], 4096
        $region40: #{tpu_custom_call.1} parent=31 // pred_fallthru
          _
        %s199 = sand.u32 %s29, 1
        %s200 = scalar_lea.sflag [#allocation3], %s199
        %s201 = sand.u32 %s29, 1
        %s202 = smul.addr %s201, 512
        %s203 = scalar_lea.vmem [#allocation2], %s202
        %p204 = pneg %p42
        %p205 = pneg %p39
        %p206 = pneg %p63
        %p207 = pneg %p60
        %p208 = pneg %p84
        %p209 = pneg %p81
        %p210 = pneg %p110
        %p211 = pneg %p107
        %s212 = sand.u32 %s97, 1
        %s213 = scalar_lea.sflag [#allocation4], %s212
        %s214 = sand.u32 %s97, 1
        %s215 = smul.addr %s214, 256
        %s216 = scalar_lea.vmem [#allocation7], %s215
        %s217 = smul.u32 32, %s21
        %s218 = ssub.s32 38, %s217
        %p219 = scmp.lt.s32.totalorder %s218, 32
        %s220 = scalar_select %p219, %s218, 32
        %s221 = smul.u32 8, %s220
        %s222 = smul.u32 %s221, 2
        %s223 = smul.u32 32, %s21
        %s224 = ssub.s32 38, %s223
        %p225 = scmp.lt.s32.totalorder %s224, 32
        %s226 = scalar_select %p225, %s224, 32
        %s227 = smul.u32 8, %s226
        %v228 = vld [vmem:[%s188] sm:$0xff]
        %v229 = vld [vmem:[%s188 + $0x8] sm:$0xff]
        %v230 = vld [vmem:[%s188 + $0x10] sm:$0xff]
        %v231 = vld [vmem:[%s188 + $0x18] sm:$0xff]
        %v232 = vld [vmem:[%s188 + $0x20] sm:$0xff]
        %v233 = vld [vmem:[%s188 + $0x28] sm:$0xff]
        %v234 = vld [vmem:[%s188 + $0x30] sm:$0xff]
        %v235 = vld [vmem:[%s188 + $0x38] sm:$0xff]
        %v236 = vld [vmem:[%s188 + $0x40] sm:$0xff]
        %v237 = vld [vmem:[%s188 + $0x48] sm:$0xff]
        %v238 = vld [vmem:[%s188 + $0x50] sm:$0xff]
        %v239 = vld [vmem:[%s188 + $0x58] sm:$0xff]
        %v240 = vld [vmem:[%s188 + $0x60] sm:$0xff]
        %v241 = vld [vmem:[%s188 + $0x68] sm:$0xff]
        %v242 = vld [vmem:[%s188 + $0x70] sm:$0xff]
        %v243 = vld [vmem:[%s188 + $0x78] sm:$0xff]
        %v244 = vld [vmem:[%s188 + $0x80] sm:$0xff]
        %v245 = vld [vmem:[%s188 + $0x88] sm:$0xff]
        %v246 = vld [vmem:[%s188 + $0x90] sm:$0xff]
        %v247 = vld [vmem:[%s188 + $0x98] sm:$0xff]
        %v248 = vld [vmem:[%s188 + $0xa0] sm:$0xff]
        %v249 = vld [vmem:[%s188 + $0xa8] sm:$0xff]
        %v250 = vld [vmem:[%s188 + $0xb0] sm:$0xff]
        %v251 = vld [vmem:[%s188 + $0xb8] sm:$0xff]
        %v252 = vld [vmem:[%s188 + $0xc0] sm:$0xff]
        %v253 = vld [vmem:[%s188 + $0xc8] sm:$0xff]
        %v254 = vld [vmem:[%s188 + $0xd0] sm:$0xff]
        %v255 = vld [vmem:[%s188 + $0xd8] sm:$0xff]
        %v256 = vld [vmem:[%s188 + $0xe0] sm:$0xff]
        %v257 = vld [vmem:[%s188 + $0xe8] sm:$0xff]
        %v258 = vld [vmem:[%s188 + $0xf0] sm:$0xff]
        %v259 = vld [vmem:[%s188 + $0xf8] sm:$0xff]
        %v260 = vld [vmem:[%s188 + $0x100] sm:$0xff]
        %v261 = vld [vmem:[%s188 + $0x108] sm:$0xff]
        %v262 = vld [vmem:[%s188 + $0x110] sm:$0xff]
        %v263 = vld [vmem:[%s188 + $0x118] sm:$0xff]
        %v264 = vld [vmem:[%s188 + $0x120] sm:$0xff]
        %v265 = vld [vmem:[%s188 + $0x128] sm:$0xff]
        %v266 = vld [vmem:[%s188 + $0x130] sm:$0xff]
        %v267 = vld [vmem:[%s188 + $0x138] sm:$0xff]
        %v268 = vld [vmem:[%s188 + $0x140] sm:$0xff]
        %v269 = vld [vmem:[%s188 + $0x148] sm:$0xff]
        %v270 = vld [vmem:[%s188 + $0x150] sm:$0xff]
        %v271 = vld [vmem:[%s188 + $0x158] sm:$0xff]
        %v272 = vld [vmem:[%s188 + $0x160] sm:$0xff]
        %v273 = vld [vmem:[%s188 + $0x168] sm:$0xff]
        %v274 = vld [vmem:[%s188 + $0x170] sm:$0xff]
        %v275 = vld [vmem:[%s188 + $0x178] sm:$0xff]
        %v276 = vld [vmem:[%s188 + $0x180] sm:$0xff]
        %v277 = vld [vmem:[%s188 + $0x188] sm:$0xff]
        %v278 = vld [vmem:[%s188 + $0x190] sm:$0xff]
        %v279 = vld [vmem:[%s188 + $0x198] sm:$0xff]
        %v280 = vld [vmem:[%s188 + $0x1a0] sm:$0xff]
        %v281 = vld [vmem:[%s188 + $0x1a8] sm:$0xff]
        %v282 = vld [vmem:[%s188 + $0x1b0] sm:$0xff]
        %v283 = vld [vmem:[%s188 + $0x1b8] sm:$0xff]
        %v284 = vld [vmem:[%s188 + $0x1c0] sm:$0xff]
        %v285 = vld [vmem:[%s188 + $0x1c8] sm:$0xff]
        %v286 = vld [vmem:[%s188 + $0x1d0] sm:$0xff]
        %v287 = vld [vmem:[%s188 + $0x1d8] sm:$0xff]
        %v288 = vld [vmem:[%s188 + $0x1e0] sm:$0xff]
        %v289 = vld [vmem:[%s188 + $0x1e8] sm:$0xff]
        %v290 = vld [vmem:[%s188 + $0x1f0] sm:$0xff]
        %v291 = vld [vmem:[%s188 + $0x1f8] sm:$0xff]
        %v292 = vld [vmem:[#allocation5] sm:$0xff]
        %v293 = vld [vmem:[#allocation5 + $0x8] sm:$0xff]
        %v294 = vld [vmem:[#allocation5 + $0x10] sm:$0xff]
        %v295 = vld [vmem:[#allocation5 + $0x18] sm:$0xff]
        %v296 = vld [vmem:[#allocation5 + $0x20] sm:$0xff]
        %v297 = vld [vmem:[#allocation5 + $0x28] sm:$0xff]
        %v298 = vld [vmem:[#allocation5 + $0x30] sm:$0xff]
        %v299 = vld [vmem:[#allocation5 + $0x38] sm:$0xff]
        %v300 = vld [vmem:[#allocation5 + $0x40] sm:$0xff]
        %v301 = vld [vmem:[#allocation5 + $0x48] sm:$0xff]
        %v302 = vld [vmem:[#allocation5 + $0x50] sm:$0xff]
        %v303 = vld [vmem:[#allocation5 + $0x58] sm:$0xff]
        %v304 = vld [vmem:[#allocation5 + $0x60] sm:$0xff]
        %v305 = vld [vmem:[#allocation5 + $0x68] sm:$0xff]
        %v306 = vld [vmem:[#allocation5 + $0x70] sm:$0xff]
        %v307 = vld [vmem:[#allocation5 + $0x78] sm:$0xff]
        %v308 = vld [vmem:[#allocation5 + $0x80] sm:$0xff]
        %v309 = vld [vmem:[#allocation5 + $0x88] sm:$0xff]
        %v310 = vld [vmem:[#allocation5 + $0x90] sm:$0xff]
        %v311 = vld [vmem:[#allocation5 + $0x98] sm:$0xff]
        %v312 = vld [vmem:[#allocation5 + $0xa0] sm:$0xff]
        %v313 = vld [vmem:[#allocation5 + $0xa8] sm:$0xff]
        %v314 = vld [vmem:[#allocation5 + $0xb0] sm:$0xff]
        %v315 = vld [vmem:[#allocation5 + $0xb8] sm:$0xff]
        %v316 = vld [vmem:[#allocation5 + $0xc0] sm:$0xff]
        %v317 = vld [vmem:[#allocation5 + $0xc8] sm:$0xff]
        %v318 = vld [vmem:[#allocation5 + $0xd0] sm:$0xff]
        %v319 = vld [vmem:[#allocation5 + $0xd8] sm:$0xff]
        %v320 = vld [vmem:[#allocation5 + $0xe0] sm:$0xff]
        %v321 = vld [vmem:[#allocation5 + $0xe8] sm:$0xff]
        %v322 = vld [vmem:[#allocation5 + $0xf0] sm:$0xff]
        %v323 = vld [vmem:[#allocation5 + $0xf8] sm:$0xff]
        %v324 = vld [vmem:[%s2] sm:$0x1]
        %v326 = vperm.slane %v324, 0
        %328 = vmatpush.msra.mxu0 %v307
        %329 = vmatpush.msra.mxu0 %v306
        %330 = vmatpush.msra.mxu0 %v305
        %331 = vmatpush.msra.mxu0 %v304
        %332 = vmatpush.msra.mxu0 %v303
        %333 = vmatpush.msra.mxu0 %v302
        %334 = vmatpush.msra.mxu0 %v301
        %335 = vmatpush.msra.mxu0 %v300
        %336 = vmatpush.msra.mxu0 %v299
        %337 = vmatpush.msra.mxu0 %v298
        %338 = vmatpush.msra.mxu0 %v297
        %339 = vmatpush.msra.mxu0 %v296
        %340 = vmatpush.msra.mxu0 %v295
        %341 = vmatpush.msra.mxu0 %v294
        %342 = vmatpush.msra.mxu0 %v293
        %343 = vmatpush.msra.mxu0 %v292
        %344 = vmatmul.f32.gmra.mxu0 %v228
        %v345 = vpop.f32.mrf.mxu0
        %v346 = vadd.f32 %v326, %v345
        %347 = vmatmul.f32.gmra.mxu0 %v230
        %v348 = vpop.f32.mrf.mxu0
        %v349 = vadd.f32 %v326, %v348
        %350 = vmatmul.f32.gmra.mxu0 %v232
        %v351 = vpop.f32.mrf.mxu0
        %v352 = vadd.f32 %v326, %v351
        %353 = vmatmul.f32.gmra.mxu0 %v234
        %v354 = vpop.f32.mrf.mxu0
        %v355 = vadd.f32 %v326, %v354
        %356 = vmatmul.f32.gmra.mxu0 %v236
        %v357 = vpop.f32.mrf.mxu0
        %v358 = vadd.f32 %v326, %v357
        %359 = vmatmul.f32.gmra.mxu0 %v238
        %v360 = vpop.f32.mrf.mxu0
        %v361 = vadd.f32 %v326, %v360
        %362 = vmatmul.f32.gmra.mxu0 %v240
        %v363 = vpop.f32.mrf.mxu0
        %v364 = vadd.f32 %v326, %v363
        %365 = vmatmul.f32.gmra.mxu0 %v242
        %v366 = vpop.f32.mrf.mxu0
        %v367 = vadd.f32 %v326, %v366
        %368 = vmatmul.f32.gmra.mxu0 %v244
        %v369 = vpop.f32.mrf.mxu0
        %v370 = vadd.f32 %v326, %v369
        %371 = vmatmul.f32.gmra.mxu0 %v246
        %v372 = vpop.f32.mrf.mxu0
        %v373 = vadd.f32 %v326, %v372
        %374 = vmatmul.f32.gmra.mxu0 %v248
        %v375 = vpop.f32.mrf.mxu0
        %v376 = vadd.f32 %v326, %v375
        %377 = vmatmul.f32.gmra.mxu0 %v250
        %v378 = vpop.f32.mrf.mxu0
        %v379 = vadd.f32 %v326, %v378
        %380 = vmatmul.f32.gmra.mxu0 %v252
        %v381 = vpop.f32.mrf.mxu0
        %v382 = vadd.f32 %v326, %v381
        %383 = vmatmul.f32.gmra.mxu0 %v254
        %v384 = vpop.f32.mrf.mxu0
        %v385 = vadd.f32 %v326, %v384
        %386 = vmatmul.f32.gmra.mxu0 %v256
        %v387 = vpop.f32.mrf.mxu0
        %v388 = vadd.f32 %v326, %v387
        %389 = vmatmul.f32.gmra.mxu0 %v258
        %v390 = vpop.f32.mrf.mxu0
        %v391 = vadd.f32 %v326, %v390
        %392 = vmatmul.f32.gmra.mxu0 %v260
        %v393 = vpop.f32.mrf.mxu0
        %v394 = vadd.f32 %v326, %v393
        %395 = vmatmul.f32.gmra.mxu0 %v262
        %v396 = vpop.f32.mrf.mxu0
        %v397 = vadd.f32 %v326, %v396
        %398 = vmatmul.f32.gmra.mxu0 %v264
        %v399 = vpop.f32.mrf.mxu0
        %v400 = vadd.f32 %v326, %v399
        %401 = vmatmul.f32.gmra.mxu0 %v266
        %v402 = vpop.f32.mrf.mxu0
        %v403 = vadd.f32 %v326, %v402
        %404 = vmatmul.f32.gmra.mxu0 %v268
        %v405 = vpop.f32.mrf.mxu0
        %v406 = vadd.f32 %v326, %v405
        %407 = vmatmul.f32.gmra.mxu0 %v270
        %v408 = vpop.f32.mrf.mxu0
        %v409 = vadd.f32 %v326, %v408
        %410 = vmatmul.f32.gmra.mxu0 %v272
        %v411 = vpop.f32.mrf.mxu0
        %v412 = vadd.f32 %v326, %v411
        %413 = vmatmul.f32.gmra.mxu0 %v274
        %v414 = vpop.f32.mrf.mxu0
        %v415 = vadd.f32 %v326, %v414
        %416 = vmatmul.f32.gmra.mxu0 %v276
        %v417 = vpop.f32.mrf.mxu0
        %v418 = vadd.f32 %v326, %v417
        %419 = vmatmul.f32.gmra.mxu0 %v278
        %v420 = vpop.f32.mrf.mxu0
        %v421 = vadd.f32 %v326, %v420
        %422 = vmatmul.f32.gmra.mxu0 %v280
        %v423 = vpop.f32.mrf.mxu0
        %v424 = vadd.f32 %v326, %v423
        %425 = vmatmul.f32.gmra.mxu0 %v282
        %v426 = vpop.f32.mrf.mxu0
        %v427 = vadd.f32 %v326, %v426
        %428 = vmatmul.f32.gmra.mxu0 %v284
        %v429 = vpop.f32.mrf.mxu0
        %v430 = vadd.f32 %v326, %v429
        %431 = vmatmul.f32.gmra.mxu0 %v286
        %v432 = vpop.f32.mrf.mxu0
        %v433 = vadd.f32 %v326, %v432
        %434 = vmatmul.f32.gmra.mxu0 %v288
        %v435 = vpop.f32.mrf.mxu0
        %v436 = vadd.f32 %v326, %v435
        %437 = vmatmul.f32.gmra.mxu0 %v290
        %v438 = vpop.f32.mrf.mxu0
        %v439 = vadd.f32 %v326, %v438
        %440 = vdwg.mxu0
        %441 = vmatpush.msra.mxu0 %v323
        %442 = vmatpush.msra.mxu0 %v322
        %443 = vmatpush.msra.mxu0 %v321
        %444 = vmatpush.msra.mxu0 %v320
        %445 = vmatpush.msra.mxu0 %v319
        %446 = vmatpush.msra.mxu0 %v318
        %447 = vmatpush.msra.mxu0 %v317
        %448 = vmatpush.msra.mxu0 %v316
        %449 = vmatpush.msra.mxu0 %v315
        %450 = vmatpush.msra.mxu0 %v314
        %451 = vmatpush.msra.mxu0 %v313
        %452 = vmatpush.msra.mxu0 %v312
        %453 = vmatpush.msra.mxu0 %v311
        %454 = vmatpush.msra.mxu0 %v310
        %455 = vmatpush.msra.mxu0 %v309
        %456 = vmatpush.msra.mxu0 %v308
        %457 = vmatmul.f32.gmra.mxu0 %v229
        %v458 = vpop.f32.mrf.mxu0
        %v459 = vadd.f32 %v346, %v458
        %460 = vmatmul.f32.gmra.mxu0 %v231
        %v461 = vpop.f32.mrf.mxu0
        %v462 = vadd.f32 %v349, %v461
        %463 = vmatmul.f32.gmra.mxu0 %v233
        %v464 = vpop.f32.mrf.mxu0
        %v465 = vadd.f32 %v352, %v464
        %466 = vmatmul.f32.gmra.mxu0 %v235
        %v467 = vpop.f32.mrf.mxu0
        %v468 = vadd.f32 %v355, %v467
        %469 = vmatmul.f32.gmra.mxu0 %v237
        %v470 = vpop.f32.mrf.mxu0
        %v471 = vadd.f32 %v358, %v470
        %472 = vmatmul.f32.gmra.mxu0 %v239
        %v473 = vpop.f32.mrf.mxu0
        %v474 = vadd.f32 %v361, %v473
        %475 = vmatmul.f32.gmra.mxu0 %v241
        %v476 = vpop.f32.mrf.mxu0
        %v477 = vadd.f32 %v364, %v476
        %478 = vmatmul.f32.gmra.mxu0 %v243
        %v479 = vpop.f32.mrf.mxu0
        %v480 = vadd.f32 %v367, %v479
        %481 = vmatmul.f32.gmra.mxu0 %v245
        %v482 = vpop.f32.mrf.mxu0
        %v483 = vadd.f32 %v370, %v482
        %484 = vmatmul.f32.gmra.mxu0 %v247
        %v485 = vpop.f32.mrf.mxu0
        %v486 = vadd.f32 %v373, %v485
        %487 = vmatmul.f32.gmra.mxu0 %v249
        %v488 = vpop.f32.mrf.mxu0
        %v489 = vadd.f32 %v376, %v488
        %490 = vmatmul.f32.gmra.mxu0 %v251
        %v491 = vpop.f32.mrf.mxu0
        %v492 = vadd.f32 %v379, %v491
        %493 = vmatmul.f32.gmra.mxu0 %v253
        %v494 = vpop.f32.mrf.mxu0
        %v495 = vadd.f32 %v382, %v494
        %496 = vmatmul.f32.gmra.mxu0 %v255
        %v497 = vpop.f32.mrf.mxu0
        %v498 = vadd.f32 %v385, %v497
        %499 = vmatmul.f32.gmra.mxu0 %v257
        %v500 = vpop.f32.mrf.mxu0
        %v501 = vadd.f32 %v388, %v500
        %502 = vmatmul.f32.gmra.mxu0 %v259
        %v503 = vpop.f32.mrf.mxu0
        %v504 = vadd.f32 %v391, %v503
        %505 = vmatmul.f32.gmra.mxu0 %v261
        %v506 = vpop.f32.mrf.mxu0
        %v507 = vadd.f32 %v394, %v506
        %508 = vmatmul.f32.gmra.mxu0 %v263
        %v509 = vpop.f32.mrf.mxu0
        %v510 = vadd.f32 %v397, %v509
        %511 = vmatmul.f32.gmra.mxu0 %v265
        %v512 = vpop.f32.mrf.mxu0
        %v513 = vadd.f32 %v400, %v512
        %514 = vmatmul.f32.gmra.mxu0 %v267
        %v515 = vpop.f32.mrf.mxu0
        %v516 = vadd.f32 %v403, %v515
        %517 = vmatmul.f32.gmra.mxu0 %v269
        %v518 = vpop.f32.mrf.mxu0
        %v519 = vadd.f32 %v406, %v518
        %520 = vmatmul.f32.gmra.mxu0 %v271
        %v521 = vpop.f32.mrf.mxu0
        %v522 = vadd.f32 %v409, %v521
        %523 = vmatmul.f32.gmra.mxu0 %v273
        %v524 = vpop.f32.mrf.mxu0
        %v525 = vadd.f32 %v412, %v524
        %526 = vmatmul.f32.gmra.mxu0 %v275
        %v527 = vpop.f32.mrf.mxu0
        %v528 = vadd.f32 %v415, %v527
        %529 = vmatmul.f32.gmra.mxu0 %v277
        %v530 = vpop.f32.mrf.mxu0
        %v531 = vadd.f32 %v418, %v530
        %532 = vmatmul.f32.gmra.mxu0 %v279
        %v533 = vpop.f32.mrf.mxu0
        %v534 = vadd.f32 %v421, %v533
        %535 = vmatmul.f32.gmra.mxu0 %v281
        %v536 = vpop.f32.mrf.mxu0
        %v537 = vadd.f32 %v424, %v536
        %538 = vmatmul.f32.gmra.mxu0 %v283
        %v539 = vpop.f32.mrf.mxu0
        %v540 = vadd.f32 %v427, %v539
        %541 = vmatmul.f32.gmra.mxu0 %v285
        %v542 = vpop.f32.mrf.mxu0
        %v543 = vadd.f32 %v430, %v542
        %544 = vmatmul.f32.gmra.mxu0 %v287
        %v545 = vpop.f32.mrf.mxu0
        %v546 = vadd.f32 %v433, %v545
        %547 = vmatmul.f32.gmra.mxu0 %v289
        %v548 = vpop.f32.mrf.mxu0
        %v549 = vadd.f32 %v436, %v548
        %550 = vmatmul.f32.gmra.mxu0 %v291
        %v551 = vpop.f32.mrf.mxu0
        %v552 = vadd.f32 %v439, %v551
        %553 = vdwg.mxu0
        %554 = vst [vmem:[%s216] sm:$0xff] %v459
        %555 = vst [vmem:[%s216 + $0x8] sm:$0xff] %v462
        %556 = vst [vmem:[%s216 + $0x10] sm:$0xff] %v465
        %557 = vst [vmem:[%s216 + $0x18] sm:$0xff] %v468
        %558 = vst [vmem:[%s216 + $0x20] sm:$0xff] %v471
        %559 = vst [vmem:[%s216 + $0x28] sm:$0xff] %v474
        %560 = vst [vmem:[%s216 + $0x30] sm:$0xff] %v477
        %561 = vst [vmem:[%s216 + $0x38] sm:$0xff] %v480
        %562 = vst [vmem:[%s216 + $0x40] sm:$0xff] %v483
        %563 = vst [vmem:[%s216 + $0x48] sm:$0xff] %v486
        %564 = vst [vmem:[%s216 + $0x50] sm:$0xff] %v489
        %565 = vst [vmem:[%s216 + $0x58] sm:$0xff] %v492
        %566 = vst [vmem:[%s216 + $0x60] sm:$0xff] %v495
        %567 = vst [vmem:[%s216 + $0x68] sm:$0xff] %v498
        %568 = vst [vmem:[%s216 + $0x70] sm:$0xff] %v501
        %569 = vst [vmem:[%s216 + $0x78] sm:$0xff] %v504
        %570 = vst [vmem:[%s216 + $0x80] sm:$0xff] %v507
        %571 = vst [vmem:[%s216 + $0x88] sm:$0xff] %v510
        %572 = vst [vmem:[%s216 + $0x90] sm:$0xff] %v513
        %573 = vst [vmem:[%s216 + $0x98] sm:$0xff] %v516
        %574 = vst [vmem:[%s216 + $0xa0] sm:$0xff] %v519
        %575 = vst [vmem:[%s216 + $0xa8] sm:$0xff] %v522
        %576 = vst [vmem:[%s216 + $0xb0] sm:$0xff] %v525
        %577 = vst [vmem:[%s216 + $0xb8] sm:$0xff] %v528
        %578 = vst [vmem:[%s216 + $0xc0] sm:$0xff] %v531
        %579 = vst [vmem:[%s216 + $0xc8] sm:$0xff] %v534
        %580 = vst [vmem:[%s216 + $0xd0] sm:$0xff] %v537
        %581 = vst [vmem:[%s216 + $0xd8] sm:$0xff] %v540
        %582 = vst [vmem:[%s216 + $0xe0] sm:$0xff] %v543
        %583 = vst [vmem:[%s216 + $0xe8] sm:$0xff] %v546
        %584 = vst [vmem:[%s216 + $0xf0] sm:$0xff] %v549
        %585 = vst [vmem:[%s216 + $0xf8] sm:$0xff] %v552
        %s586 = sand.u32 %s97, 1
        %s587 = scalar_lea.sflag [#allocation4], %s586
        %s588 = sand.u32 %s97, 1
        %s589 = smul.addr %s588, 256
        %s590 = scalar_lea.vmem [#allocation7], %s589
        // Predicated region
        $region41: #{tpu_custom_call.1} parent=31 // pred_check
          %p591 = pneg %p107
        $region42: #{tpu_custom_call.1} parent=31 // pred_check_branch
          %593 = sbr.rel (%p591) target = $region44
        $region43: #{tpu_custom_call.1} parent=31 // pred_region
          %s594 = smul.u32 32, %s21
          %s595 = ssub.s32 38, %s594
          %p596 = scmp.lt.s32.totalorder %s595, 32
          %s597 = scalar_select %p596, %s595, 32
          %s598 = smul.u32 8, %s597
          %s599 = ssub.s32 256, %s598
          %s600 = sshll.u32 %s599, 4
          %601 = vsyncadd %s587, %s600
          %p602 = scmp.ne.s32.totalorder 0, %s598
          %s603 = smul.addr %s594, 8
          %s604 = scalar_lea.hbm %s3, %s603
          %s605 = smul.u32 8, %s597
          %s606 = sshll.u32 %s590, 4
          %s607 = int_to_ptr.vmem [resolvable:$true] %s606
          %s608 = sshll.u32 %s604, 4
          %s609 = int_to_ptr.hbm [resolvable:$true] %s608
          %s610 = sshll.u32 %s605, 4
          %614 = dma.vmem_to_hbm [thread:$0]  (%p602), %s607, %s610, %s609, %s587, 128, 128, 8
        $region44: #{tpu_custom_call.1} parent=31 // pred_fallthru
          _
      $region32: #{tpu_custom_call.1} parent=5 // pred_fallthru
        _
      %p615 = scmp.le.s32.totalorder 2, %s16
      // Predicated region
      $region45: #{tpu_custom_call.1} parent=5 // pred_check
        %p616 = pneg %p615
      $region46: #{tpu_custom_call.1} parent=5 // pred_check_branch
        %618 = sbr.rel (%p616) target = $region48
      $region47: #{tpu_custom_call.1} parent=5 // pred_region
        %s619 = ssub.s32 %s16, 2
        // Predicated region
        $region49: #{tpu_custom_call.1} parent=47 // pred_check
          %p620 = pneg %p113
        $region50: #{tpu_custom_call.1} parent=47 // pred_check_branch
          %622 = sbr.rel (%p620) target = $region52
        $region51: #{tpu_custom_call.1} parent=47 // pred_region
          %s623 = sand.u32 %s98, 1
          %s624 = scalar_lea.sflag [#allocation4], %s623
          %s625 = sand.u32 %s98, 1
          %s626 = smul.addr %s625, 256
          %s627 = scalar_lea.vmem [#allocation7], %s626
          %629 = dma.done %s624, 4096
        $region52: #{tpu_custom_call.1} parent=47 // pred_fallthru
          _
      $region48: #{tpu_custom_call.1} parent=5 // pred_fallthru
        _
    $region6: #{tpu_custom_call.1} parent=1 // loop_footer
      %s20 = sadd.s32 1, %s16
    $region7: #{tpu_custom_call.1} parent=1 // loop_footer_branch
      %15 = sbr.rel target = $region3
    $region8: #{tpu_custom_call.1} parent=1 // loop_exit
      _
    %630 = vsyncpa [#allocation3], 1
    %s631 = scalar_lea.sflag [#allocation3], 1
    %632 = vsyncpa %s631, 1
    %633 = vsyncpa [#allocation6], 1
    %634 = vsyncpa [#allocation4], 1
    %s635 = scalar_lea.sflag [#allocation4], 1
    %636 = vsyncpa %s635, 1

</llo_original>
